<compile_context>
chip_gen: v6e
topology: v6e:2x2x1
jax: 0.10.0
libtpu: 0.0.40
codegen_flags: <defaults>
</compile_context>

<pallas_src>
import numpy as np
import jax
import jax.numpy as jnp
from jax.experimental import pallas as pl
from jax.experimental.pallas import tpu as pltpu


_INV_LN10 = np.float32(1.0 / np.log(10.0))


# ----------------------------------------------------------------------------
# Deterministic parameter construction (replaces downloaded buffers)
# ----------------------------------------------------------------------------
def _hann_window(n_fft: int) -> np.ndarray:
    # torch.hann_window(n_fft) default is periodic=True
    n = np.arange(n_fft, dtype=np.float64)
    return 0.5 - 0.5 * np.cos(2.0 * np.pi * n / n_fft)


def _mel_filters(n_mels: int, n_fft: int, sr: float = 16000.0) -> np.ndarray:
    """librosa-style slaney mel filterbank, shape [n_mels, n_fft//2 + 1]."""
    fmin, fmax = 0.0, sr / 2.0
    f_sp = 200.0 / 3.0
    min_log_hz = 1000.0
    min_log_mel = min_log_hz / f_sp
    logstep = np.log(6.4) / 27.0

    def hz_to_mel(f):
        f = np.asarray(f, dtype=np.float64)
        mel = f / f_sp
        return np.where(
            f >= min_log_hz,
            min_log_mel + np.log(np.maximum(f, min_log_hz) / min_log_hz) / logstep,
            mel,
        )

    def mel_to_hz(m):
        m = np.asarray(m, dtype=np.float64)
        f = m * f_sp
        return np.where(
            m >= min_log_mel,
            min_log_hz * np.exp(logstep * (m - min_log_mel)),
            f,
        )

    mels = np.linspace(hz_to_mel(fmin), hz_to_mel(fmax), n_mels + 2)
    mel_f = mel_to_hz(mels)                                   # [n_mels + 2]
    fftfreqs = np.linspace(0.0, sr / 2.0, n_fft // 2 + 1)     # [n_freq]

    fdiff = np.diff(mel_f)
    ramps = mel_f[:, None] - fftfreqs[None, :]
    lower = -ramps[:-2] / fdiff[:-1, None]
    upper = ramps[2:] / fdiff[1:, None]
    weights = np.maximum(0.0, np.minimum(lower, upper))
    enorm = 2.0 / (mel_f[2: n_mels + 2] - mel_f[:n_mels])     # slaney norm
    weights = weights * enorm[:, None]
    return weights.astype(np.float32)


def _combined_dft_base(n_fft: int, n_freq_pad: int) -> np.ndarray:
    """Window-folded one-sided real-DFT base, cos and sin side by side.

    Returns [n_fft, 2 * n_freq_pad] float32 with
      base[n, k]              = hann[n] * cos(2*pi*n*k/n_fft)   for k < n_freq
      base[n, n_freq_pad + k] = hann[n] * sin(2*pi*n*k/n_fft)   for k < n_freq
    Padded frequency columns are exactly zero.  K = n_fft (400): no zero K rows.
    """
    n_freq = n_fft // 2 + 1
    n = np.arange(n_fft, dtype=np.float64)
    k = np.arange(n_freq, dtype=np.float64)
    ang = 2.0 * np.pi * np.outer(n, k) / n_fft
    win = _hann_window(n_fft)[:, None]
    base = np.zeros((n_fft, 2 * n_freq_pad), np.float32)
    base[:, :n_freq] = (win * np.cos(ang)).astype(np.float32)
    base[:, n_freq_pad:n_freq_pad + n_freq] = (win * np.sin(ang)).astype(np.float32)
    return base


def _round_up(x: int, m: int) -> int:
    return ((x + m - 1) // m) * m


# ----------------------------------------------------------------------------
# Wrapper: framing + constants in plain JAX/numpy, hot path in Pallas.
# ----------------------------------------------------------------------------
def whisper_mel_spectrogram(audio, n_mels=80, n_fft=400, hop_length=160,
                            sample_rate=16000.0, tile_t_max=512):
    audio = jnp.asarray(audio, dtype=jnp.float32)
    L = audio.shape[-1]
    hop = hop_length
    pad = n_fft // 2
    n_freq = n_fft // 2 + 1

    # Lane-aligned padded sizes (zero padding is exact: padded freq bins carry
    # zero power; padded mel columns are sliced off before the global max).
    n_freq_pad = _round_up(n_freq, 128)        # 201 -> 256
    n_mels_pad = _round_up(n_mels, 128)        # 80  -> 128
    n_freq2 = 2 * n_freq_pad                   # combined cos||sin width (512)

    # STFT frame count: center=True gives L//hop + 1 frames; module drops last.
    T = L // hop

    # Tile sizing: big tiles amortize the ~0.35us/grid-step overhead; multiple
    # of 8 (defensively rounded); prefer an even number of tiles so the two
    # v7x TensorCores both get work on the "parallel" axis.
    tile_t_max = max(8, (int(tile_t_max) // 8) * 8)
    tile_t = min(tile_t_max, _round_up(T, 8))
    num_tiles = -(-T // tile_t)
    if num_tiles > 1 and num_tiles % 2 == 1:
        cand = _round_up(-(-T // (num_tiles + 1)), 8)
        if cand >= 8:
            cand_tiles = -(-T // cand)
            if cand_tiles % 2 == 0:
                tile_t, num_tiles = cand, cand_tiles
    t_pad = num_tiles * tile_t

    # Reflect-pad like torch.stft(center=True, pad_mode='reflect'), extend with
    # zeros to cover the (exactly-zero, later-sliced-off) tile-padding frames,
    # then materialize frames wrapper-side: one lane-legal [t_pad, 400] slab so
    # the kernel issues a single K=400 MXU dot per tile (no split-K).
    padded = jnp.pad(audio, (pad, pad), mode="reflect")
    needed = (t_pad - 1) * hop + n_fft
    extra = max(0, needed - int(padded.shape[0]))
    if extra:
        padded = jnp.pad(padded, (0, extra))
    idx = jnp.arange(t_pad)[:, None] * hop + jnp.arange(n_fft)[None, :]
    frames = padded[idx]                                      # [t_pad, n_fft] f32

    base = jnp.asarray(_combined_dft_base(n_fft, n_freq_pad))  # [n_fft, 512]

    mel_fb = _mel_filters(n_mels, n_fft, sample_rate)          # [n_mels, n_freq]
    mel_t_np = np.zeros((n_freq_pad, n_mels_pad), np.float32)
    mel_t_np[:n_freq, :n_mels] = mel_fb.T
    mel_t = jnp.asarray(mel_t_np)                              # [256, 128]

    def kernel(frames_ref, base_ref, mel_ref, out_ref):
        # One MXU dot against the window-folded cos||sin base: accumulation
        # happens in the MXU result path, not via VMEM accumulator round-trips.
        ri = jnp.dot(frames_ref[...], base_ref[...],
                     preferred_element_type=jnp.float32)       # [tile_t, 512]
        re = ri[:, :n_freq_pad]                                # 128-lane aligned
        im = ri[:, n_freq_pad:]
        power = re * re + im * im                              # |stft|^2
        mel = jnp.dot(power, mel_ref[...],
                      preferred_element_type=jnp.float32)      # [tile_t, 128]
        # log10 only; global-max clamp + normalization hoisted to the wrapper.
        out_ref[...] = jnp.log(mel + 1e-10) * _INV_LN10

    flops = (2 * t_pad * n_fft * n_freq2            # DFT dot
             + 2 * t_pad * n_freq_pad * n_mels_pad  # mel dot
             + 3 * t_pad * n_freq_pad               # power
             + 2 * t_pad * n_mels_pad)              # log scale/add
    bytes_accessed = 4 * (t_pad * n_fft + n_fft * n_freq2
                          + n_freq_pad * n_mels_pad + t_pad * n_mels_pad)
    cost = pl.CostEstimate(flops=flops,
                           transcendentals=t_pad * n_mels_pad,
                           bytes_accessed=bytes_accessed)

    out = pl.pallas_call(
        kernel,
        out_shape=jax.ShapeDtypeStruct((t_pad, n_mels_pad), jnp.float32),
        grid=(num_tiles,),
        in_specs=[
            pl.BlockSpec((tile_t, n_fft), lambda i: (i, 0)),         # frames tile
            pl.BlockSpec((n_fft, n_freq2), lambda i: (0, 0)),        # cos||sin base
            pl.BlockSpec((n_freq_pad, n_mels_pad), lambda i: (0, 0)),  # mel^T
        ],
        out_specs=pl.BlockSpec((tile_t, n_mels_pad), lambda i: (i, 0)),
        compiler_params=pltpu.CompilerParams(
            dimension_semantics=("parallel",),
            vmem_limit_bytes=32 * 1024 * 1024,
        ),
        cost_estimate=cost,
    )(frames, base, mel_t)

    # Hoisted epilogue on the small valid region: global max -> clamp -> scale.
    log_spec = out[:T, :n_mels]                        # drop tile / lane padding
    log_spec = jnp.maximum(log_spec, jnp.max(log_spec) - 8.0)
    log_spec = (log_spec + 4.0) / 4.0
    return log_spec.T[None, :, None, :]                # [1, n_mels, 1, T]


# Pure-JAX reference (same math path) used only for a sanity check.
def _reference(audio, n_mels=80, n_fft=400, hop_length=160, sample_rate=16000.0):
    audio = jnp.asarray(audio, dtype=jnp.float32)
    L = audio.shape[-1]
    pad = n_fft // 2
    padded = jnp.pad(audio, (pad, pad), mode="reflect")
    T = L // hop_length
    idx = jnp.arange(T)[:, None] * hop_length + jnp.arange(n_fft)[None, :]
    frames = padded[idx] * jnp.asarray(_hann_window(n_fft), dtype=jnp.float32)[None, :]
    stft = jnp.fft.rfft(frames, n=n_fft, axis=-1)            # [T, n_freq]
    power = jnp.abs(stft) ** 2
    mel = jnp.asarray(_mel_filters(n_mels, n_fft, sample_rate)) @ power.T
    log_spec = jnp.log10(mel + 1e-10)
    log_spec = jnp.maximum(log_spec, jnp.max(log_spec) - 8.0)
    log_spec = (log_spec + 4.0) / 4.0
    return log_spec[None, :, None, :]


if __name__ == "__main__":
    key = jax.random.PRNGKey(0)
    # Small input consistent with the module defaults (n_fft=400, hop=160):
    # 1280 samples -> 8 kept frames.
    audio = jax.random.normal(key, (1280,), dtype=jnp.float32)

    out = whisper_mel_spectrogram(audio)
    out = jax.block_until_ready(out)
    assert out.shape == (1, 80, 1, 8), out.shape

    ref = jax.block_until_ready(_reference(audio))
    np.testing.assert_allclose(np.asarray(out), np.asarray(ref),
                               rtol=1e-3, atol=1e-3)
    print("KERNEL_OK")
</pallas_src>

<mosaic_0001>
module attributes {stable_mosaic.version = 11 : i64} {
  func.func @kernel(%arg0: i32, %arg1: memref<8x400xf32, #tpu.memory_space<vmem>>, %arg2: memref<400x512xf32, #tpu.memory_space<vmem>>, %arg3: memref<256x128xf32, #tpu.memory_space<vmem>>, %arg4: memref<8x128xf32, #tpu.memory_space<vmem>>) attributes {dimension_semantics = [#tpu.dimension_semantics<parallel>], iteration_bounds = array<i64: 1>, scalar_prefetch = 0 : i64, scratch_operands = 0 : i64, tpu.core_type = #tpu.core_type<tc>, window_params = [{transform_indices = @transform_0, window_bounds = array<i64: 8, 400>}, {pipeline_mode = #tpu.pipeline_mode<synchronous>, transform_indices = @transform_1, window_bounds = array<i64: 400, 512>}, {pipeline_mode = #tpu.pipeline_mode<synchronous>, transform_indices = @transform_2, window_bounds = array<i64: 256, 128>}, {transform_indices = @transform_3, window_bounds = array<i64: 8, 128>}]} {
    %c0 = arith.constant 0 : index
    %c0_0 = arith.constant 0 : index
    %0 = vector.load %arg1[%c0, %c0_0] : memref<8x400xf32, #tpu.memory_space<vmem>>, vector<8x400xf32>
    %c0_1 = arith.constant 0 : index
    %c0_2 = arith.constant 0 : index
    %1 = vector.load %arg2[%c0_1, %c0_2] : memref<400x512xf32, #tpu.memory_space<vmem>>, vector<400x512xf32>
    %cst = arith.constant dense<0.000000e+00> : vector<8x512xf32>
    %2 = tpu.matmul %0, %1, %cst {dimension_numbers = #tpu.dot_dimension_numbers<[1], [0], [0], [1], [0, 0, 1, 1], [], []>} : vector<8x400xf32>, vector<400x512xf32>, vector<8x512xf32> -> vector<8x512xf32>
    %3 = vector.extract_strided_slice %2 {offsets = [0, 0], sizes = [8, 256], strides = [1, 1]} : vector<8x512xf32> to vector<8x256xf32>
    %4 = vector.extract_strided_slice %2 {offsets = [0, 256], sizes = [8, 256], strides = [1, 1]} : vector<8x512xf32> to vector<8x256xf32>
    %5 = arith.mulf %3, %3 : vector<8x256xf32>
    %6 = arith.mulf %4, %4 : vector<8x256xf32>
    %7 = arith.addf %5, %6 : vector<8x256xf32>
    %c0_3 = arith.constant 0 : index
    %c0_4 = arith.constant 0 : index
    %8 = vector.load %arg3[%c0_3, %c0_4] : memref<256x128xf32, #tpu.memory_space<vmem>>, vector<256x128xf32>
    %cst_5 = arith.constant dense<0.000000e+00> : vector<8x128xf32>
    %9 = tpu.matmul %7, %8, %cst_5 {dimension_numbers = #tpu.dot_dimension_numbers<[1], [0], [0], [1], [0, 0, 1, 1], [], []>} : vector<8x256xf32>, vector<256x128xf32>, vector<8x128xf32> -> vector<8x128xf32>
    %cst_6 = arith.constant 1.000000e-10 : f32
    %10 = vector.broadcast %cst_6 : f32 to vector<8x128xf32>
    %11 = arith.addf %9, %10 : vector<8x128xf32>
    %12 = math.log %11 : vector<8x128xf32>
    %cst_7 = arith.constant 0.434294492 : f32
    %13 = vector.broadcast %cst_7 : f32 to vector<8x128xf32>
    %14 = arith.mulf %12, %13 : vector<8x128xf32>
    %c0_8 = arith.constant 0 : index
    %c0_9 = arith.constant 0 : index
    %15 = vector.load %arg4[%c0_8, %c0_9] : memref<8x128xf32, #tpu.memory_space<vmem>>, vector<8x128xf32>
    tpu.vector_store %arg4[%c0_8, %c0_9], %14 {strides = array<i32>} : memref<8x128xf32, #tpu.memory_space<vmem>>, vector<8x128xf32>,
    return
  }
  func.func @transform_0(%arg0: i32) -> (i32, i32) {
    %c0_i32 = arith.constant 0 : i32
    %c0_i32_0 = arith.constant 0 : i32
    return %arg0, %c0_i32 : i32, i32
  }
  func.func @transform_1(%arg0: i32) -> (i32, i32) {
    %c0_i32 = arith.constant 0 : i32
    %c0_i32_0 = arith.constant 0 : i32
    %c0_i32_1 = arith.constant 0 : i32
    return %c0_i32, %c0_i32_0 : i32, i32
  }
  func.func @transform_2(%arg0: i32) -> (i32, i32) {
    %c0_i32 = arith.constant 0 : i32
    %c0_i32_0 = arith.constant 0 : i32
    %c0_i32_1 = arith.constant 0 : i32
    return %c0_i32, %c0_i32_0 : i32, i32
  }
  func.func @transform_3(%arg0: i32) -> (i32, i32) {
    %c0_i32 = arith.constant 0 : i32
    %c0_i32_0 = arith.constant 0 : i32
    return %arg0, %c0_i32 : i32, i32
  }
}

</mosaic_0001>

<llo_original>
// kernel: tpu_custom_call.1
$region0: #{tpu_custom_call.1}
  #allocation0 [shape = 'u32[]', space=smem, size = 0x4, offset = 0x4, fixed_abs, tag = 'smem constant byte address 0x4 - core index']
  #allocation1 [shape = 'u32[144,128]{1,0:T(1,128)}', space=vmem, size = 0x12000, scoped, tag = 'internal scratch']
  %s0 = inlined_call_operand.hbm [shape: f32[8,400], index: 0, kind: input, shape index: {}]
  %s1 = inlined_call_operand.hbm [shape: f32[400,512], index: 1, kind: input, shape index: {}]
  %s2 = inlined_call_operand.hbm [shape: f32[256,128], index: 2, kind: input, shape index: {}]
  %s3 = inlined_call_operand.hbm [shape: f32[8,128], index: 3, kind: output, shape index: {}]
  %s4 = sld [smem:[#allocation0]]
  $region34: #{tpu_custom_call.1} parent=0
    _
  %s6 = ssub.s32 1, %s4
  %s7 = scalar_select 0, %s6, %s4
  $region1: #{tpu_custom_call.1} parent=0
    #allocation2 [shape = 'u8[16384]{0}', space=vmem, size = 0x4000, scoped, tag = 'input window, operand 0, single buffered']
    #allocation3 [shape = 's32[1]{0}', space=sflag, size = 0x4, scoped, tag = 'scoped memory for tpu_custom_call.1']
    #allocation4 [shape = 's32[1]{0}', space=sflag, size = 0x4, scoped, tag = 'scoped memory for tpu_custom_call.1']
    #allocation5 [shape = 'u8[819200]{0}', space=vmem, size = 0xc8000, scoped, tag = 'input window, operand 1, single buffered']
    #allocation6 [shape = 's32[1]{0}', space=sflag, size = 0x4, scoped, tag = 'scoped memory for tpu_custom_call.1']
    #allocation7 [shape = 'u8[131072]{0}', space=vmem, size = 0x20000, scoped, tag = 'input window, operand 2, single buffered']
    #allocation8 [shape = 'u8[4096]{0}', space=vmem, size = 0x1000, scoped, tag = 'output window, operand 0, single buffered']
    %8 = vsyncpa [#allocation3], 0
    %9 = vsyncpa [#allocation6], 0
    %10 = vsyncpa [#allocation4], 0
    // Predicated region
    $region2: #{tpu_custom_call.1} parent=1 // pred_check
      _
    $region3: #{tpu_custom_call.1} parent=1 // pred_check_branch
      %12 = sbr.rel (0) target = $region5
    $region4: #{tpu_custom_call.1} parent=1 // pred_region
      %s14 = ssub.s32 512, 512
      %15 = vsyncadd [#allocation3], %s14
      %s17 = sshll.u32 [#allocation2], 4
      %s18 = int_to_ptr.vmem [resolvable:$true] %s17
      %20 = dma.hbm_to_vmem [thread:$0]  %s0, 512, %s18, [#allocation3]
    $region5: #{tpu_custom_call.1} parent=1 // pred_fallthru
      _
    // Predicated region
    $region6: #{tpu_custom_call.1} parent=1 // pred_check
      _
    $region7: #{tpu_custom_call.1} parent=1 // pred_check_branch
      %22 = sbr.rel (0) target = $region9
    $region8: #{tpu_custom_call.1} parent=1 // pred_region
      %s24 = ssub.s32 25600, 25600
      %25 = vsyncadd [#allocation6], %s24
      %s26 = sshll.u32 [#allocation5], 4
      %s27 = int_to_ptr.vmem [resolvable:$true] %s26
      %32 = dma.hbm_to_vmem [thread:$0]  %s1, 25600, %s27, [#allocation6], 512, 512, 32
    $region9: #{tpu_custom_call.1} parent=1 // pred_fallthru
      _
    // Predicated region
    $region10: #{tpu_custom_call.1} parent=1 // pred_check
      _
    $region11: #{tpu_custom_call.1} parent=1 // pred_check_branch
      %34 = sbr.rel (0) target = $region13
    $region12: #{tpu_custom_call.1} parent=1 // pred_region
      %s36 = ssub.s32 4096, 4096
      %37 = vsyncadd [#allocation6], %s36
      %s38 = sshll.u32 [#allocation7], 4
      %s39 = int_to_ptr.vmem [resolvable:$true] %s38
      %44 = dma.hbm_to_vmem [thread:$0]  %s2, 4096, %s39, [#allocation6], 128, 128, 8
    $region13: #{tpu_custom_call.1} parent=1 // pred_fallthru
      _
    // Predicated region
    $region14: #{tpu_custom_call.1} parent=1 // pred_check
      _
    $region15: #{tpu_custom_call.1} parent=1 // pred_check_branch
      %46 = sbr.rel (0) target = $region17
    $region16: #{tpu_custom_call.1} parent=1 // pred_region
      %47 = dma.done [#allocation3], 512
    $region17: #{tpu_custom_call.1} parent=1 // pred_fallthru
      _
    // Predicated region
    $region18: #{tpu_custom_call.1} parent=1 // pred_check
      _
    $region19: #{tpu_custom_call.1} parent=1 // pred_check_branch
      %49 = sbr.rel (0) target = $region21
    $region20: #{tpu_custom_call.1} parent=1 // pred_region
      %50 = dma.done [#allocation6], 25600
    $region21: #{tpu_custom_call.1} parent=1 // pred_fallthru
      _
    // Predicated region
    $region22: #{tpu_custom_call.1} parent=1 // pred_check
      _
    $region23: #{tpu_custom_call.1} parent=1 // pred_check_branch
      %52 = sbr.rel (0) target = $region25
    $region24: #{tpu_custom_call.1} parent=1 // pred_region
      %53 = dma.done [#allocation6], 4096
    $region25: #{tpu_custom_call.1} parent=1 // pred_fallthru
      _
    %v54 = vld [vmem:[#allocation2] sm:$0xff]
    %v55 = vld [vmem:[#allocation2 + $0x8] sm:$0xff]
    %v56 = vld [vmem:[#allocation2 + $0x10] sm:$0xff]
    %v57 = vld [vmem:[#allocation2 + $0x18] sm:$0xff]
    %v58 = vld [vmem:[#allocation5] sm:$0xff]
    %v59 = vld [vmem:[#allocation5 + $0x8] sm:$0xff]
    %v60 = vld [vmem:[#allocation5 + $0x10] sm:$0xff]
    %v61 = vld [vmem:[#allocation5 + $0x18] sm:$0xff]
    %v62 = vld [vmem:[#allocation5 + $0x20] sm:$0xff]
    %v63 = vld [vmem:[#allocation5 + $0x28] sm:$0xff]
    %v64 = vld [vmem:[#allocation5 + $0x30] sm:$0xff]
    %v65 = vld [vmem:[#allocation5 + $0x38] sm:$0xff]
    %v66 = vld [vmem:[#allocation5 + $0x40] sm:$0xff]
    %v67 = vld [vmem:[#allocation5 + $0x48] sm:$0xff]
    %v68 = vld [vmem:[#allocation5 + $0x50] sm:$0xff]
    %v69 = vld [vmem:[#allocation5 + $0x58] sm:$0xff]
    %v70 = vld [vmem:[#allocation5 + $0x60] sm:$0xff]
    %v71 = vld [vmem:[#allocation5 + $0x68] sm:$0xff]
    %v72 = vld [vmem:[#allocation5 + $0x70] sm:$0xff]
    %v73 = vld [vmem:[#allocation5 + $0x78] sm:$0xff]
    %v74 = vld [vmem:[#allocation5 + $0x80] sm:$0xff]
    %v75 = vld [vmem:[#allocation5 + $0x88] sm:$0xff]
    %v76 = vld [vmem:[#allocation5 + $0x90] sm:$0xff]
    %v77 = vld [vmem:[#allocation5 + $0x98] sm:$0xff]
    %v78 = vld [vmem:[#allocation5 + $0xa0] sm:$0xff]
    %v79 = vld [vmem:[#allocation5 + $0xa8] sm:$0xff]
    %v80 = vld [vmem:[#allocation5 + $0xb0] sm:$0xff]
    %v81 = vld [vmem:[#allocation5 + $0xb8] sm:$0xff]
    %v82 = vld [vmem:[#allocation5 + $0xc0] sm:$0xff]
    %v83 = vld [vmem:[#allocation5 + $0xc8] sm:$0xff]
    %v84 = vld [vmem:[#allocation5 + $0xd0] sm:$0xff]
    %v85 = vld [vmem:[#allocation5 + $0xd8] sm:$0xff]
    %v86 = vld [vmem:[#allocation5 + $0xe0] sm:$0xff]
    %v87 = vld [vmem:[#allocation5 + $0xe8] sm:$0xff]
    %v88 = vld [vmem:[#allocation5 + $0xf0] sm:$0xff]
    %v89 = vld [vmem:[#allocation5 + $0xf8] sm:$0xff]
    %v90 = vld [vmem:[#allocation5 + $0x100] sm:$0xff]
    %v91 = vld [vmem:[#allocation5 + $0x108] sm:$0xff]
    %v92 = vld [vmem:[#allocation5 + $0x110] sm:$0xff]
    %v93 = vld [vmem:[#allocation5 + $0x118] sm:$0xff]
    %v94 = vld [vmem:[#allocation5 + $0x120] sm:$0xff]
    %v95 = vld [vmem:[#allocation5 + $0x128] sm:$0xff]
    %v96 = vld [vmem:[#allocation5 + $0x130] sm:$0xff]
    %v97 = vld [vmem:[#allocation5 + $0x138] sm:$0xff]
    %v98 = vld [vmem:[#allocation5 + $0x140] sm:$0xff]
    %v99 = vld [vmem:[#allocation5 + $0x148] sm:$0xff]
    %v100 = vld [vmem:[#allocation5 + $0x150] sm:$0xff]
    %v101 = vld [vmem:[#allocation5 + $0x158] sm:$0xff]
    %v102 = vld [vmem:[#allocation5 + $0x160] sm:$0xff]
    %v103 = vld [vmem:[#allocation5 + $0x168] sm:$0xff]
    %v104 = vld [vmem:[#allocation5 + $0x170] sm:$0xff]
    %v105 = vld [vmem:[#allocation5 + $0x178] sm:$0xff]
    %v106 = vld [vmem:[#allocation5 + $0x180] sm:$0xff]
    %v107 = vld [vmem:[#allocation5 + $0x188] sm:$0xff]
    %v108 = vld [vmem:[#allocation5 + $0x190] sm:$0xff]
    %v109 = vld [vmem:[#allocation5 + $0x198] sm:$0xff]
    %v110 = vld [vmem:[#allocation5 + $0x1a0] sm:$0xff]
    %v111 = vld [vmem:[#allocation5 + $0x1a8] sm:$0xff]
    %v112 = vld [vmem:[#allocation5 + $0x1b0] sm:$0xff]
    %v113 = vld [vmem:[#allocation5 + $0x1b8] sm:$0xff]
    %v114 = vld [vmem:[#allocation5 + $0x1c0] sm:$0xff]
    %v115 = vld [vmem:[#allocation5 + $0x1c8] sm:$0xff]
    %v116 = vld [vmem:[#allocation5 + $0x1d0] sm:$0xff]
    %v117 = vld [vmem:[#allocation5 + $0x1d8] sm:$0xff]
    %v118 = vld [vmem:[#allocation5 + $0x1e0] sm:$0xff]
    %v119 = vld [vmem:[#allocation5 + $0x1e8] sm:$0xff]
    %v120 = vld [vmem:[#allocation5 + $0x1f0] sm:$0xff]
    %v121 = vld [vmem:[#allocation5 + $0x1f8] sm:$0xff]
    %v122 = vld [vmem:[#allocation5 + $0x200] sm:$0xff]
    %v123 = vld [vmem:[#allocation5 + $0x208] sm:$0xff]
    %v124 = vld [vmem:[#allocation5 + $0x210] sm:$0xff]
    %v125 = vld [vmem:[#allocation5 + $0x218] sm:$0xff]
    %v126 = vld [vmem:[#allocation5 + $0x220] sm:$0xff]
    %v127 = vld [vmem:[#allocation5 + $0x228] sm:$0xff]
    %v128 = vld [vmem:[#allocation5 + $0x230] sm:$0xff]
    %v129 = vld [vmem:[#allocation5 + $0x238] sm:$0xff]
    %v130 = vld [vmem:[#allocation5 + $0x240] sm:$0xff]
    %v131 = vld [vmem:[#allocation5 + $0x248] sm:$0xff]
    %v132 = vld [vmem:[#allocation5 + $0x250] sm:$0xff]
    %v133 = vld [vmem:[#allocation5 + $0x258] sm:$0xff]
    %v134 = vld [vmem:[#allocation5 + $0x260] sm:$0xff]
    %v135 = vld [vmem:[#allocation5 + $0x268] sm:$0xff]
    %v136 = vld [vmem:[#allocation5 + $0x270] sm:$0xff]
    %v137 = vld [vmem:[#allocation5 + $0x278] sm:$0xff]
    %v138 = vld [vmem:[#allocation5 + $0x280] sm:$0xff]
    %v139 = vld [vmem:[#allocation5 + $0x288] sm:$0xff]
    %v140 = vld [vmem:[#allocation5 + $0x290] sm:$0xff]
    %v141 = vld [vmem:[#allocation5 + $0x298] sm:$0xff]
    %v142 = vld [vmem:[#allocation5 + $0x2a0] sm:$0xff]
    %v143 = vld [vmem:[#allocation5 + $0x2a8] sm:$0xff]
    %v144 = vld [vmem:[#allocation5 + $0x2b0] sm:$0xff]
    %v145 = vld [vmem:[#allocation5 + $0x2b8] sm:$0xff]
    %v146 = vld [vmem:[#allocation5 + $0x2c0] sm:$0xff]
    %v147 = vld [vmem:[#allocation5 + $0x2c8] sm:$0xff]
    %v148 = vld [vmem:[#allocation5 + $0x2d0] sm:$0xff]
    %v149 = vld [vmem:[#allocation5 + $0x2d8] sm:$0xff]
    %v150 = vld [vmem:[#allocation5 + $0x2e0] sm:$0xff]
    %v151 = vld [vmem:[#allocation5 + $0x2e8] sm:$0xff]
    %v152 = vld [vmem:[#allocation5 + $0x2f0] sm:$0xff]
    %v153 = vld [vmem:[#allocation5 + $0x2f8] sm:$0xff]
    %v154 = vld [vmem:[#allocation5 + $0x300] sm:$0xff]
    %v155 = vld [vmem:[#allocation5 + $0x308] sm:$0xff]
    %v156 = vld [vmem:[#allocation5 + $0x310] sm:$0xff]
    %v157 = vld [vmem:[#allocation5 + $0x318] sm:$0xff]
    %v158 = vld [vmem:[#allocation5 + $0x320] sm:$0xff]
    %v159 = vld [vmem:[#allocation5 + $0x328] sm:$0xff]
    %v160 = vld [vmem:[#allocation5 + $0x330] sm:$0xff]
    %v161 = vld [vmem:[#allocation5 + $0x338] sm:$0xff]
    %v162 = vld [vmem:[#allocation5 + $0x340] sm:$0xff]
    %v163 = vld [vmem:[#allocation5 + $0x348] sm:$0xff]
    %v164 = vld [vmem:[#allocation5 + $0x350] sm:$0xff]
    %v165 = vld [vmem:[#allocation5 + $0x358] sm:$0xff]
    %v166 = vld [vmem:[#allocation5 + $0x360] sm:$0xff]
    %v167 = vld [vmem:[#allocation5 + $0x368] sm:$0xff]
    %v168 = vld [vmem:[#allocation5 + $0x370] sm:$0xff]
    %v169 = vld [vmem:[#allocation5 + $0x378] sm:$0xff]
    %v170 = vld [vmem:[#allocation5 + $0x380] sm:$0xff]
    %v171 = vld [vmem:[#allocation5 + $0x388] sm:$0xff]
    %v172 = vld [vmem:[#allocation5 + $0x390] sm:$0xff]
    %v173 = vld [vmem:[#allocation5 + $0x398] sm:$0xff]
    %v174 = vld [vmem:[#allocation5 + $0x3a0] sm:$0xff]
    %v175 = vld [vmem:[#allocation5 + $0x3a8] sm:$0xff]
    %v176 = vld [vmem:[#allocation5 + $0x3b0] sm:$0xff]
    %v177 = vld [vmem:[#allocation5 + $0x3b8] sm:$0xff]
    %v178 = vld [vmem:[#allocation5 + $0x3c0] sm:$0xff]
    %v179 = vld [vmem:[#allocation5 + $0x3c8] sm:$0xff]
    %v180 = vld [vmem:[#allocation5 + $0x3d0] sm:$0xff]
    %v181 = vld [vmem:[#allocation5 + $0x3d8] sm:$0xff]
    %v182 = vld [vmem:[#allocation5 + $0x3e0] sm:$0xff]
    %v183 = vld [vmem:[#allocation5 + $0x3e8] sm:$0xff]
    %v184 = vld [vmem:[#allocation5 + $0x3f0] sm:$0xff]
    %v185 = vld [vmem:[#allocation5 + $0x3f8] sm:$0xff]
    %v186 = vld [vmem:[#allocation5 + $0x400] sm:$0xff]
    %v187 = vld [vmem:[#allocation5 + $0x408] sm:$0xff]
    %v188 = vld [vmem:[#allocation5 + $0x410] sm:$0xff]
    %v189 = vld [vmem:[#allocation5 + $0x418] sm:$0xff]
    %v190 = vld [vmem:[#allocation5 + $0x420] sm:$0xff]
    %v191 = vld [vmem:[#allocation5 + $0x428] sm:$0xff]
    %v192 = vld [vmem:[#allocation5 + $0x430] sm:$0xff]
    %v193 = vld [vmem:[#allocation5 + $0x438] sm:$0xff]
    %v194 = vld [vmem:[#allocation5 + $0x440] sm:$0xff]
    %v195 = vld [vmem:[#allocation5 + $0x448] sm:$0xff]
    %v196 = vld [vmem:[#allocation5 + $0x450] sm:$0xff]
    %v197 = vld [vmem:[#allocation5 + $0x458] sm:$0xff]
    %v198 = vld [vmem:[#allocation5 + $0x460] sm:$0xff]
    %v199 = vld [vmem:[#allocation5 + $0x468] sm:$0xff]
    %v200 = vld [vmem:[#allocation5 + $0x470] sm:$0xff]
    %v201 = vld [vmem:[#allocation5 + $0x478] sm:$0xff]
    %v202 = vld [vmem:[#allocation5 + $0x480] sm:$0xff]
    %v203 = vld [vmem:[#allocation5 + $0x488] sm:$0xff]
    %v204 = vld [vmem:[#allocation5 + $0x490] sm:$0xff]
    %v205 = vld [vmem:[#allocation5 + $0x498] sm:$0xff]
    %v206 = vld [vmem:[#allocation5 + $0x4a0] sm:$0xff]
    %v207 = vld [vmem:[#allocation5 + $0x4a8] sm:$0xff]
    %v208 = vld [vmem:[#allocation5 + $0x4b0] sm:$0xff]
    %v209 = vld [vmem:[#allocation5 + $0x4b8] sm:$0xff]
    %v210 = vld [vmem:[#allocation5 + $0x4c0] sm:$0xff]
    %v211 = vld [vmem:[#allocation5 + $0x4c8] sm:$0xff]
    %v212 = vld [vmem:[#allocation5 + $0x4d0] sm:$0xff]
    %v213 = vld [vmem:[#allocation5 + $0x4d8] sm:$0xff]
    %v214 = vld [vmem:[#allocation5 + $0x4e0] sm:$0xff]
    %v215 = vld [vmem:[#allocation5 + $0x4e8] sm:$0xff]
    %v216 = vld [vmem:[#allocation5 + $0x4f0] sm:$0xff]
    %v217 = vld [vmem:[#allocation5 + $0x4f8] sm:$0xff]
    %v218 = vld [vmem:[#allocation5 + $0x500] sm:$0xff]
    %v219 = vld [vmem:[#allocation5 + $0x508] sm:$0xff]
    %v220 = vld [vmem:[#allocation5 + $0x510] sm:$0xff]
    %v221 = vld [vmem:[#allocation5 + $0x518] sm:$0xff]
    %v222 = vld [vmem:[#allocation5 + $0x520] sm:$0xff]
    %v223 = vld [vmem:[#allocation5 + $0x528] sm:$0xff]
    %v224 = vld [vmem:[#allocation5 + $0x530] sm:$0xff]
    %v225 = vld [vmem:[#allocation5 + $0x538] sm:$0xff]
    %v226 = vld [vmem:[#allocation5 + $0x540] sm:$0xff]
    %v227 = vld [vmem:[#allocation5 + $0x548] sm:$0xff]
    %v228 = vld [vmem:[#allocation5 + $0x550] sm:$0xff]
    %v229 = vld [vmem:[#allocation5 + $0x558] sm:$0xff]
    %v230 = vld [vmem:[#allocation5 + $0x560] sm:$0xff]
    %v231 = vld [vmem:[#allocation5 + $0x568] sm:$0xff]
    %v232 = vld [vmem:[#allocation5 + $0x570] sm:$0xff]
    %v233 = vld [vmem:[#allocation5 + $0x578] sm:$0xff]
    %v234 = vld [vmem:[#allocation5 + $0x580] sm:$0xff]
    %v235 = vld [vmem:[#allocation5 + $0x588] sm:$0xff]
    %v236 = vld [vmem:[#allocation5 + $0x590] sm:$0xff]
    %v237 = vld [vmem:[#allocation5 + $0x598] sm:$0xff]
    %v238 = vld [vmem:[#allocation5 + $0x5a0] sm:$0xff]
    %v239 = vld [vmem:[#allocation5 + $0x5a8] sm:$0xff]
    %v240 = vld [vmem:[#allocation5 + $0x5b0] sm:$0xff]
    %v241 = vld [vmem:[#allocation5 + $0x5b8] sm:$0xff]
    %v242 = vld [vmem:[#allocation5 + $0x5c0] sm:$0xff]
    %v243 = vld [vmem:[#allocation5 + $0x5c8] sm:$0xff]
    %v244 = vld [vmem:[#allocation5 + $0x5d0] sm:$0xff]
    %v245 = vld [vmem:[#allocation5 + $0x5d8] sm:$0xff]
    %v246 = vld [vmem:[#allocation5 + $0x5e0] sm:$0xff]
    %v247 = vld [vmem:[#allocation5 + $0x5e8] sm:$0xff]
    %v248 = vld [vmem:[#allocation5 + $0x5f0] sm:$0xff]
    %v249 = vld [vmem:[#allocation5 + $0x5f8] sm:$0xff]
    %v250 = vld [vmem:[#allocation5 + $0x600] sm:$0xff]
    %v251 = vld [vmem:[#allocation5 + $0x608] sm:$0xff]
    %v252 = vld [vmem:[#allocation5 + $0x610] sm:$0xff]
    %v253 = vld [vmem:[#allocation5 + $0x618] sm:$0xff]
    %v254 = vld [vmem:[#allocation5 + $0x620] sm:$0xff]
    %v255 = vld [vmem:[#allocation5 + $0x628] sm:$0xff]
    %v256 = vld [vmem:[#allocation5 + $0x630] sm:$0xff]
    %v257 = vld [vmem:[#allocation5 + $0x638] sm:$0xff]
    %vm258 = vcmask 130048
    %v260 = vsel %vm258, %v57, 0
    %262 = vmatprep.subr.mxu0 %v119
    %263 = vmatpush1.msra.mxu0 %v118
    %264 = vmatprep.subr.mxu0 %v115
    %265 = vmatpush1.msra.mxu0 %v114
    %266 = vmatprep.subr.mxu0 %v111
    %267 = vmatpush1.msra.mxu0 %v110
    %268 = vmatprep.subr.mxu0 %v107
    %269 = vmatpush1.msra.mxu0 %v106
    %270 = vmatprep.subr.mxu0 %v103
    %271 = vmatpush1.msra.mxu0 %v102
    %272 = vmatprep.subr.mxu0 %v99
    %273 = vmatpush1.msra.mxu0 %v98
    %274 = vmatprep.subr.mxu0 %v95
    %275 = vmatpush1.msra.mxu0 %v94
    %276 = vmatprep.subr.mxu0 %v91
    %277 = vmatpush1.msra.mxu0 %v90
    %278 = vmatprep.subr.mxu0 %v87
    %279 = vmatpush1.msra.mxu0 %v86
    %280 = vmatprep.subr.mxu0 %v83
    %281 = vmatpush1.msra.mxu0 %v82
    %282 = vmatprep.subr.mxu0 %v79
    %283 = vmatpush1.msra.mxu0 %v78
    %284 = vmatprep.subr.mxu0 %v75
    %285 = vmatpush1.msra.mxu0 %v74
    %286 = vmatprep.subr.mxu0 %v71
    %287 = vmatpush1.msra.mxu0 %v70
    %288 = vmatprep.subr.mxu0 %v67
    %289 = vmatpush1.msra.mxu0 %v66
    %290 = vmatprep.subr.mxu0 %v63
    %291 = vmatpush1.msra.mxu0 %v62
    %292 = vmatprep.subr.mxu0 %v59
    %293 = vmatpush1.msra.mxu0 %v58
    %294 = vmatprep.subr.mxu0 %v183
    %295 = vmatpush2.msra.mxu0 %v182
    %296 = vmatprep.subr.mxu0 %v179
    %297 = vmatpush2.msra.mxu0 %v178
    %298 = vmatprep.subr.mxu0 %v175
    %299 = vmatpush2.msra.mxu0 %v174
    %300 = vmatprep.subr.mxu0 %v171
    %301 = vmatpush2.msra.mxu0 %v170
    %302 = vmatprep.subr.mxu0 %v167
    %303 = vmatpush2.msra.mxu0 %v166
    %304 = vmatprep.subr.mxu0 %v163
    %305 = vmatpush2.msra.mxu0 %v162
    %306 = vmatprep.subr.mxu0 %v159
    %307 = vmatpush2.msra.mxu0 %v158
    %308 = vmatprep.subr.mxu0 %v155
    %309 = vmatpush2.msra.mxu0 %v154
    %310 = vmatprep.subr.mxu0 %v151
    %311 = vmatpush2.msra.mxu0 %v150
    %312 = vmatprep.subr.mxu0 %v147
    %313 = vmatpush2.msra.mxu0 %v146
    %314 = vmatprep.subr.mxu0 %v143
    %315 = vmatpush2.msra.mxu0 %v142
    %316 = vmatprep.subr.mxu0 %v139
    %317 = vmatpush2.msra.mxu0 %v138
    %318 = vmatprep.subr.mxu0 %v135
    %319 = vmatpush2.msra.mxu0 %v134
    %320 = vmatprep.subr.mxu0 %v131
    %321 = vmatpush2.msra.mxu0 %v130
    %322 = vmatprep.subr.mxu0 %v127
    %323 = vmatpush2.msra.mxu0 %v126
    %324 = vmatprep.subr.mxu0 %v123
    %325 = vmatpush2.msra.mxu0 %v122
    %326 = vmatprep.mubr.f32.mxu0 %v55
    %327 = vmatmul.mubr.f32.gmra.mxu0 %v54
    %v328 = vpop.f32.mrf.mxu0
    %v329 = vadd.f32 0.0, %v328
    %v330 = vpop.f32.mrf.mxu0
    %v331 = vadd.f32 0.0, %v330
    %332 = vdwg.mxu0
    %333 = vmatprep.subr.mxu0 %v247
    %334 = vmatpush1.msra.mxu0 %v246
    %335 = vmatprep.subr.mxu0 %v243
    %336 = vmatpush1.msra.mxu0 %v242
    %337 = vmatprep.subr.mxu0 %v239
    %338 = vmatpush1.msra.mxu0 %v238
    %339 = vmatprep.subr.mxu0 %v235
    %340 = vmatpush1.msra.mxu0 %v234
    %341 = vmatprep.subr.mxu0 %v231
    %342 = vmatpush1.msra.mxu0 %v230
    %343 = vmatprep.subr.mxu0 %v227
    %344 = vmatpush1.msra.mxu0 %v226
    %345 = vmatprep.subr.mxu0 %v223
    %346 = vmatpush1.msra.mxu0 %v222
    %347 = vmatprep.subr.mxu0 %v219
    %348 = vmatpush1.msra.mxu0 %v218
    %349 = vmatprep.subr.mxu0 %v215
    %350 = vmatpush1.msra.mxu0 %v214
    %351 = vmatprep.subr.mxu0 %v211
    %352 = vmatpush1.msra.mxu0 %v210
    %353 = vmatprep.subr.mxu0 %v207
    %354 = vmatpush1.msra.mxu0 %v206
    %355 = vmatprep.subr.mxu0 %v203
    %356 = vmatpush1.msra.mxu0 %v202
    %357 = vmatprep.subr.mxu0 %v199
    %358 = vmatpush1.msra.mxu0 %v198
    %359 = vmatprep.subr.mxu0 %v195
    %360 = vmatpush1.msra.mxu0 %v194
    %361 = vmatprep.subr.mxu0 %v191
    %362 = vmatpush1.msra.mxu0 %v190
    %363 = vmatprep.subr.mxu0 %v187
    %364 = vmatpush1.msra.mxu0 %v186
    %365 = vmatprep.subr.mxu0 0.0
    %366 = vmatpush2.msra.mxu0 0.0
    %367 = vmatprep.subr.mxu0 0.0
    %368 = vmatpush2.msra.mxu0 0.0
    %369 = vmatprep.subr.mxu0 0.0
    %370 = vmatpush2.msra.mxu0 0.0
    %371 = vmatprep.subr.mxu0 0.0
    %372 = vmatpush2.msra.mxu0 0.0
    %373 = vmatprep.subr.mxu0 0.0
    %374 = vmatpush2.msra.mxu0 0.0
    %375 = vmatprep.subr.mxu0 0.0
    %376 = vmatpush2.msra.mxu0 0.0
    %377 = vmatprep.subr.mxu0 0.0
    %378 = vmatpush2.msra.mxu0 0.0
    %379 = vmatprep.subr.mxu0 0.0
    %380 = vmatpush2.msra.mxu0 0.0
    %381 = vmatprep.subr.mxu0 0.0
    %382 = vmatpush2.msra.mxu0 0.0
    %383 = vmatprep.subr.mxu0 0.0
    %384 = vmatpush2.msra.mxu0 0.0
    %385 = vmatprep.subr.mxu0 0.0
    %386 = vmatpush2.msra.mxu0 0.0
    %387 = vmatprep.subr.mxu0 0.0
    %388 = vmatpush2.msra.mxu0 0.0
    %389 = vmatprep.subr.mxu0 0.0
    %390 = vmatpush2.msra.mxu0 0.0
    %391 = vmatprep.subr.mxu0 0.0
    %392 = vmatpush2.msra.mxu0 0.0
    %393 = vmatprep.subr.mxu0 %v255
    %394 = vmatpush2.msra.mxu0 %v254
    %395 = vmatprep.subr.mxu0 %v251
    %396 = vmatpush2.msra.mxu0 %v250
    %397 = vmatprep.mubr.f32.mxu0 %v260
    %398 = vmatmul.mubr.f32.gmra.mxu0 %v56
    %v399 = vpop.f32.mrf.mxu0
    %v400 = vadd.f32 %v329, %v399
    %v401 = vpop.f32.mrf.mxu0
    %v402 = vadd.f32 %v331, %v401
    %403 = vdwg.mxu0
    %404 = vmatprep.subr.mxu0 %v121
    %405 = vmatpush1.msra.mxu0 %v120
    %406 = vmatprep.subr.mxu0 %v117
    %407 = vmatpush1.msra.mxu0 %v116
    %408 = vmatprep.subr.mxu0 %v113
    %409 = vmatpush1.msra.mxu0 %v112
    %410 = vmatprep.subr.mxu0 %v109
    %411 = vmatpush1.msra.mxu0 %v108
    %412 = vmatprep.subr.mxu0 %v105
    %413 = vmatpush1.msra.mxu0 %v104
    %414 = vmatprep.subr.mxu0 %v101
    %415 = vmatpush1.msra.mxu0 %v100
    %416 = vmatprep.subr.mxu0 %v97
    %417 = vmatpush1.msra.mxu0 %v96
    %418 = vmatprep.subr.mxu0 %v93
    %419 = vmatpush1.msra.mxu0 %v92
    %420 = vmatprep.subr.mxu0 %v89
    %421 = vmatpush1.msra.mxu0 %v88
    %422 = vmatprep.subr.mxu0 %v85
    %423 = vmatpush1.msra.mxu0 %v84
    %424 = vmatprep.subr.mxu0 %v81
    %425 = vmatpush1.msra.mxu0 %v80
    %426 = vmatprep.subr.mxu0 %v77
    %427 = vmatpush1.msra.mxu0 %v76
    %428 = vmatprep.subr.mxu0 %v73
    %429 = vmatpush1.msra.mxu0 %v72
    %430 = vmatprep.subr.mxu0 %v69
    %431 = vmatpush1.msra.mxu0 %v68
    %432 = vmatprep.subr.mxu0 %v65
    %433 = vmatpush1.msra.mxu0 %v64
    %434 = vmatprep.subr.mxu0 %v61
    %435 = vmatpush1.msra.mxu0 %v60
    %436 = vmatprep.subr.mxu0 %v185
    %437 = vmatpush2.msra.mxu0 %v184
    %438 = vmatprep.subr.mxu0 %v181
    %439 = vmatpush2.msra.mxu0 %v180
    %440 = vmatprep.subr.mxu0 %v177
    %441 = vmatpush2.msra.mxu0 %v176
    %442 = vmatprep.subr.mxu0 %v173
    %443 = vmatpush2.msra.mxu0 %v172
    %444 = vmatprep.subr.mxu0 %v169
    %445 = vmatpush2.msra.mxu0 %v168
    %446 = vmatprep.subr.mxu0 %v165
    %447 = vmatpush2.msra.mxu0 %v164
    %448 = vmatprep.subr.mxu0 %v161
    %449 = vmatpush2.msra.mxu0 %v160
    %450 = vmatprep.subr.mxu0 %v157
    %451 = vmatpush2.msra.mxu0 %v156
    %452 = vmatprep.subr.mxu0 %v153
    %453 = vmatpush2.msra.mxu0 %v152
    %454 = vmatprep.subr.mxu0 %v149
    %455 = vmatpush2.msra.mxu0 %v148
    %456 = vmatprep.subr.mxu0 %v145
    %457 = vmatpush2.msra.mxu0 %v144
    %458 = vmatprep.subr.mxu0 %v141
    %459 = vmatpush2.msra.mxu0 %v140
    %460 = vmatprep.subr.mxu0 %v137
    %461 = vmatpush2.msra.mxu0 %v136
    %462 = vmatprep.subr.mxu0 %v133
    %463 = vmatpush2.msra.mxu0 %v132
    %464 = vmatprep.subr.mxu0 %v129
    %465 = vmatpush2.msra.mxu0 %v128
    %466 = vmatprep.subr.mxu0 %v125
    %467 = vmatpush2.msra.mxu0 %v124
    %468 = vmatprep.mubr.f32.mxu0 %v55
    %469 = vmatmul.mubr.f32.gmra.mxu0 %v54
    %v470 = vpop.f32.mrf.mxu0
    %v471 = vadd.f32 0.0, %v470
    %v472 = vpop.f32.mrf.mxu0
    %v473 = vadd.f32 0.0, %v472
    %474 = vdwg.mxu0
    %475 = vmatprep.subr.mxu0 %v249
    %476 = vmatpush1.msra.mxu0 %v248
    %477 = vmatprep.subr.mxu0 %v245
    %478 = vmatpush1.msra.mxu0 %v244
    %479 = vmatprep.subr.mxu0 %v241
    %480 = vmatpush1.msra.mxu0 %v240
    %481 = vmatprep.subr.mxu0 %v237
    %482 = vmatpush1.msra.mxu0 %v236
    %483 = vmatprep.subr.mxu0 %v233
    %484 = vmatpush1.msra.mxu0 %v232
    %485 = vmatprep.subr.mxu0 %v229
    %486 = vmatpush1.msra.mxu0 %v228
    %487 = vmatprep.subr.mxu0 %v225
    %488 = vmatpush1.msra.mxu0 %v224
    %489 = vmatprep.subr.mxu0 %v221
    %490 = vmatpush1.msra.mxu0 %v220
    %491 = vmatprep.subr.mxu0 %v217
    %492 = vmatpush1.msra.mxu0 %v216
    %493 = vmatprep.subr.mxu0 %v213
    %494 = vmatpush1.msra.mxu0 %v212
    %495 = vmatprep.subr.mxu0 %v209
    %496 = vmatpush1.msra.mxu0 %v208
    %497 = vmatprep.subr.mxu0 %v205
    %498 = vmatpush1.msra.mxu0 %v204
    %499 = vmatprep.subr.mxu0 %v201
    %500 = vmatpush1.msra.mxu0 %v200
    %501 = vmatprep.subr.mxu0 %v197
    %502 = vmatpush1.msra.mxu0 %v196
    %503 = vmatprep.subr.mxu0 %v193
    %504 = vmatpush1.msra.mxu0 %v192
    %505 = vmatprep.subr.mxu0 %v189
    %506 = vmatpush1.msra.mxu0 %v188
    %507 = vmatprep.subr.mxu0 0.0
    %508 = vmatpush2.msra.mxu0 0.0
    %509 = vmatprep.subr.mxu0 0.0
    %510 = vmatpush2.msra.mxu0 0.0
    %511 = vmatprep.subr.mxu0 0.0
    %512 = vmatpush2.msra.mxu0 0.0
    %513 = vmatprep.subr.mxu0 0.0
    %514 = vmatpush2.msra.mxu0 0.0
    %515 = vmatprep.subr.mxu0 0.0
    %516 = vmatpush2.msra.mxu0 0.0
    %517 = vmatprep.subr.mxu0 0.0
    %518 = vmatpush2.msra.mxu0 0.0
    %519 = vmatprep.subr.mxu0 0.0
    %520 = vmatpush2.msra.mxu0 0.0
    %521 = vmatprep.subr.mxu0 0.0
    %522 = vmatpush2.msra.mxu0 0.0
    %523 = vmatprep.subr.mxu0 0.0
    %524 = vmatpush2.msra.mxu0 0.0
    %525 = vmatprep.subr.mxu0 0.0
    %526 = vmatpush2.msra.mxu0 0.0
    %527 = vmatprep.subr.mxu0 0.0
    %528 = vmatpush2.msra.mxu0 0.0
    %529 = vmatprep.subr.mxu0 0.0
    %530 = vmatpush2.msra.mxu0 0.0
    %531 = vmatprep.subr.mxu0 0.0
    %532 = vmatpush2.msra.mxu0 0.0
    %533 = vmatprep.subr.mxu0 0.0
    %534 = vmatpush2.msra.mxu0 0.0
    %535 = vmatprep.subr.mxu0 %v257
    %536 = vmatpush2.msra.mxu0 %v256
    %537 = vmatprep.subr.mxu0 %v253
    %538 = vmatpush2.msra.mxu0 %v252
    %539 = vmatprep.mubr.f32.mxu0 %v260
    %540 = vmatmul.mubr.f32.gmra.mxu0 %v56
    %v541 = vpop.f32.mrf.mxu0
    %v542 = vadd.f32 %v471, %v541
    %v543 = vpop.f32.mrf.mxu0
    %v544 = vadd.f32 %v473, %v543
    %545 = vdwg.mxu0
    %v546 = vmul.f32 %v400, %v400
    %v547 = vmul.f32 %v402, %v402
    %v548 = vmul.f32 %v542, %v542
    %v549 = vmul.f32 %v544, %v544
    %v550 = vadd.f32 %v546, %v548
    %v551 = vadd.f32 %v547, %v549
    %v552 = vld [vmem:[#allocation7] sm:$0xff]
    %v553 = vld [vmem:[#allocation7 + $0x8] sm:$0xff]
    %v554 = vld [vmem:[#allocation7 + $0x10] sm:$0xff]
    %v555 = vld [vmem:[#allocation7 + $0x18] sm:$0xff]
    %v556 = vld [vmem:[#allocation7 + $0x20] sm:$0xff]
    %v557 = vld [vmem:[#allocation7 + $0x28] sm:$0xff]
    %v558 = vld [vmem:[#allocation7 + $0x30] sm:$0xff]
    %v559 = vld [vmem:[#allocation7 + $0x38] sm:$0xff]
    %v560 = vld [vmem:[#allocation7 + $0x40] sm:$0xff]
    %v561 = vld [vmem:[#allocation7 + $0x48] sm:$0xff]
    %v562 = vld [vmem:[#allocation7 + $0x50] sm:$0xff]
    %v563 = vld [vmem:[#allocation7 + $0x58] sm:$0xff]
    %v564 = vld [vmem:[#allocation7 + $0x60] sm:$0xff]
    %v565 = vld [vmem:[#allocation7 + $0x68] sm:$0xff]
    %v566 = vld [vmem:[#allocation7 + $0x70] sm:$0xff]
    %v567 = vld [vmem:[#allocation7 + $0x78] sm:$0xff]
    %v568 = vld [vmem:[#allocation7 + $0x80] sm:$0xff]
    %v569 = vld [vmem:[#allocation7 + $0x88] sm:$0xff]
    %v570 = vld [vmem:[#allocation7 + $0x90] sm:$0xff]
    %v571 = vld [vmem:[#allocation7 + $0x98] sm:$0xff]
    %v572 = vld [vmem:[#allocation7 + $0xa0] sm:$0xff]
    %v573 = vld [vmem:[#allocation7 + $0xa8] sm:$0xff]
    %v574 = vld [vmem:[#allocation7 + $0xb0] sm:$0xff]
    %v575 = vld [vmem:[#allocation7 + $0xb8] sm:$0xff]
    %v576 = vld [vmem:[#allocation7 + $0xc0] sm:$0xff]
    %v577 = vld [vmem:[#allocation7 + $0xc8] sm:$0xff]
    %v578 = vld [vmem:[#allocation7 + $0xd0] sm:$0xff]
    %v579 = vld [vmem:[#allocation7 + $0xd8] sm:$0xff]
    %v580 = vld [vmem:[#allocation7 + $0xe0] sm:$0xff]
    %v581 = vld [vmem:[#allocation7 + $0xe8] sm:$0xff]
    %v582 = vld [vmem:[#allocation7 + $0xf0] sm:$0xff]
    %v583 = vld [vmem:[#allocation7 + $0xf8] sm:$0xff]
    %584 = vmatprep.subr.mxu0 0.0
    %585 = vmatpush1.msra.mxu0 %v567
    %586 = vmatprep.subr.mxu0 0.0
    %587 = vmatpush1.msra.mxu0 %v566
    %588 = vmatprep.subr.mxu0 0.0
    %589 = vmatpush1.msra.mxu0 %v565
    %590 = vmatprep.subr.mxu0 0.0
    %591 = vmatpush1.msra.mxu0 %v564
    %592 = vmatprep.subr.mxu0 0.0
    %593 = vmatpush1.msra.mxu0 %v563
    %594 = vmatprep.subr.mxu0 0.0
    %595 = vmatpush1.msra.mxu0 %v562
    %596 = vmatprep.subr.mxu0 0.0
    %597 = vmatpush1.msra.mxu0 %v561
    %598 = vmatprep.subr.mxu0 0.0
    %599 = vmatpush1.msra.mxu0 %v560
    %600 = vmatprep.subr.mxu0 0.0
    %601 = vmatpush1.msra.mxu0 %v559
    %602 = vmatprep.subr.mxu0 0.0
    %603 = vmatpush1.msra.mxu0 %v558
    %604 = vmatprep.subr.mxu0 0.0
    %605 = vmatpush1.msra.mxu0 %v557
    %606 = vmatprep.subr.mxu0 0.0
    %607 = vmatpush1.msra.mxu0 %v556
    %608 = vmatprep.subr.mxu0 0.0
    %609 = vmatpush1.msra.mxu0 %v555
    %610 = vmatprep.subr.mxu0 0.0
    %611 = vmatpush1.msra.mxu0 %v554
    %612 = vmatprep.subr.mxu0 0.0
    %613 = vmatpush1.msra.mxu0 %v553
    %614 = vmatprep.subr.mxu0 0.0
    %615 = vmatpush1.msra.mxu0 %v552
    %616 = vmatprep.subr.mxu0 0.0
    %617 = vmatpush2.msra.mxu0 %v583
    %618 = vmatprep.subr.mxu0 0.0
    %619 = vmatpush2.msra.mxu0 %v582
    %620 = vmatprep.subr.mxu0 0.0
    %621 = vmatpush2.msra.mxu0 %v581
    %622 = vmatprep.subr.mxu0 0.0
    %623 = vmatpush2.msra.mxu0 %v580
    %624 = vmatprep.subr.mxu0 0.0
    %625 = vmatpush2.msra.mxu0 %v579
    %626 = vmatprep.subr.mxu0 0.0
    %627 = vmatpush2.msra.mxu0 %v578
    %628 = vmatprep.subr.mxu0 0.0
    %629 = vmatpush2.msra.mxu0 %v577
    %630 = vmatprep.subr.mxu0 0.0
    %631 = vmatpush2.msra.mxu0 %v576
    %632 = vmatprep.subr.mxu0 0.0
    %633 = vmatpush2.msra.mxu0 %v575
    %634 = vmatprep.subr.mxu0 0.0
    %635 = vmatpush2.msra.mxu0 %v574
    %636 = vmatprep.subr.mxu0 0.0
    %637 = vmatpush2.msra.mxu0 %v573
    %638 = vmatprep.subr.mxu0 0.0
    %639 = vmatpush2.msra.mxu0 %v572
    %640 = vmatprep.subr.mxu0 0.0
    %641 = vmatpush2.msra.mxu0 %v571
    %642 = vmatprep.subr.mxu0 0.0
    %643 = vmatpush2.msra.mxu0 %v570
    %644 = vmatprep.subr.mxu0 0.0
    %645 = vmatpush2.msra.mxu0 %v569
    %646 = vmatprep.subr.mxu0 0.0
    %647 = vmatpush2.msra.mxu0 %v568
    %648 = vmatprep.mubr.f32.mxu0 %v551
    %649 = vmatmul.mubr.f32.gmra.mxu0 %v550
    %v650 = vpop.f32.mrf.mxu0
    %v651 = vadd.f32 1e-10, %v650
    %v652 = vpop.f32.mrf.mxu0
    %653 = vdwg.mxu0
    %v654 = vlog2.pop %v651
    %v655 = vmul.f32 %v654, 0.6931472
    %v656 = vmul.f32 %v655, 0.4342945
    %657 = vst [vmem:[#allocation8] sm:$0xff] %v656
    // Predicated region
    $region26: #{tpu_custom_call.1} parent=1 // pred_check
      _
    $region27: #{tpu_custom_call.1} parent=1 // pred_check_branch
      %659 = sbr.rel (0) target = $region29
    $region28: #{tpu_custom_call.1} parent=1 // pred_region
      %s661 = ssub.s32 128, 128
      %662 = vsyncadd [#allocation4], %s661
      %s664 = sshll.u32 [#allocation8], 4
      %s665 = int_to_ptr.vmem [resolvable:$true] %s664
      %667 = dma.vmem_to_hbm [thread:$0]  %s665, 128, %s3, [#allocation4]
    $region29: #{tpu_custom_call.1} parent=1 // pred_fallthru
      _
    // Predicated region
    $region30: #{tpu_custom_call.1} parent=1 // pred_check
      _
    $region31: #{tpu_custom_call.1} parent=1 // pred_check_branch
      %669 = sbr.rel (0) target = $region33
    $region32: #{tpu_custom_call.1} parent=1 // pred_region
      %670 = dma.done [#allocation4], 128
    $region33: #{tpu_custom_call.1} parent=1 // pred_fallthru
      _
    %671 = vsyncpa [#allocation3], 1
    %672 = vsyncpa [#allocation6], 1
    %673 = vsyncpa [#allocation4], 1

</llo_original>
